<compile_context>
chip_gen: v7x
topology: tpu7x:2x2x1
jax: 0.10.0
libtpu: 0.0.40
codegen_flags: <defaults>
</compile_context>

<pallas_src>
import functools

import jax
import jax.numpy as jnp
from jax.experimental import pallas as pl
from jax.experimental.pallas import tpu as pltpu


def _patch_embed_kernel(x_ref, w_ref, posb_ref, cls_ref, out_ref):
    """One grid step: bk whole batches -> one (bk, N+1, D) output block.

    x_ref:    (bk, N, P)    VMEM, input dtype (f32) — cast in-kernel
    w_ref:    (P, D)        VMEM, compute dtype (resident across steps)
    posb_ref: (N, D)        VMEM, f32, pos_emb[1:] + bias (resident)
    cls_ref:  (bk, 1, D)    VMEM, f32, class_param + pos_emb[0]
    out_ref:  (bk, N+1, D)  VMEM, out dtype
    """
    bk, n, p = x_ref.shape
    d = out_ref.shape[-1]
    # In-kernel cast (hidden VPU pass) instead of a separate XLA HBM pass.
    # Reshape folds the batch group into the MXU M dim (pure relabel when
    # N % 8 == 0; VMEM-local relayout otherwise — no HBM cost either way).
    x = x_ref[...].reshape(bk * n, p).astype(w_ref.dtype)
    proj = jnp.dot(x, w_ref[...], preferred_element_type=jnp.float32)   # MXU
    body = proj.reshape(bk, n, d) + posb_ref[...][None, :, :]           # f32 VPU add
    # Row 0 of each batch slab: class token (+ pos_emb[0], folded in wrapper).
    out_ref[:, 0:1, :] = cls_ref[...].astype(out_ref.dtype)
    # Rows 1..N: projected patches (+ pos_emb[1:] + bias).
    out_ref[:, 1:, :] = body.astype(out_ref.dtype)


def _vmem_budget_bytes():
    """Generation-aware scoped-VMEM budget with headroom for Mosaic scratch."""
    try:
        phys = int(pltpu.get_tpu_info().vmem_capacity_bytes)
    except Exception:
        phys = 64 * 2**20                       # conservative (v7x-class core)
    if phys <= 64 * 2**20:                      # v7x: 64 MiB/TC -> leave ~16 MiB
        budget = (phys * 3) // 4
    else:                                       # v5e/v6e: 128 MiB physical
        budget = min(phys - 28 * 2**20, 100 * 2**20)
    return max(budget, 32 * 2**20)


def _step_vmem_bytes(bk, *, n, p, d, in_bytes, w_bytes, out_bytes):
    """Double-buffered per-step VMEM footprint estimate (+ f32 temporaries)."""
    x = 2 * bk * n * p * in_bytes
    w = 2 * p * d * w_bytes
    posb = 2 * n * d * 4
    cls = 2 * bk * d * 4
    out = 2 * bk * (n + 1) * d * out_bytes
    tmp = 2 * bk * n * d * 4                    # proj/body f32 temporaries
    return x + w + posb + cls + out + tmp


def _pick_batches_per_step(batch, est_fn, budget):
    """Largest bk (bk | B) whose VMEM estimate fits the budget, preferring
    grids with >= 2 steps (keeps both TensorCores busy under the "parallel"
    dimension semantics). Falls back to the SMALLEST tile if nothing fits."""
    divisors = [k for k in range(1, batch + 1) if batch % k == 0]
    fitting = [k for k in divisors if est_fn(k) <= budget]
    if not fitting:
        return 1
    multi_step = [k for k in fitting if batch // k >= 2]
    pool = multi_step if multi_step else fitting
    return max(pool)


def patch_embedding(patches, w_t, bias, class_param, pos_emb_table, *,
                    compute_dtype=jnp.bfloat16, out_dtype=None):
    """Fused ViT patch-embedding forward.

    patches:        (B, N, P) float32   (P = patch_size*patch_size*3)
    w_t:            (P, D)    float32   (nn.Linear weight, transposed)
    bias:           (D,)      float32
    class_param:    (B, 1, D) float32
    pos_emb_table:  (N+1, D)  float32   (nn.Embedding weight)
    returns:        (B, N+1, D) out_dtype (default: patches.dtype)
    """
    B, N, P = patches.shape
    D = w_t.shape[1]
    if out_dtype is None:
        out_dtype = patches.dtype

    # Tiny O(P*D) / O(N*D) / O(B*D) prep — negligible HBM traffic.
    w = w_t.astype(compute_dtype)                                    # (P, D)
    posb = (pos_emb_table[1:] + bias[None, :]).astype(jnp.float32)   # (N, D)
    cls = (class_param
           + pos_emb_table[0][None, None, :]).astype(jnp.float32)    # (B, 1, D)

    budget = _vmem_budget_bytes()
    est_fn = functools.partial(
        _step_vmem_bytes, n=N, p=P, d=D,
        in_bytes=jnp.dtype(patches.dtype).itemsize,
        w_bytes=jnp.dtype(compute_dtype).itemsize,
        out_bytes=jnp.dtype(out_dtype).itemsize)
    bk = _pick_batches_per_step(B, est_fn, budget)
    num_steps = B // bk
    vmem_limit = int(min(budget, max(32 * 2**20, 2 * est_fn(bk))))

    grid_spec = pl.GridSpec(
        grid=(num_steps,),
        in_specs=[
            pl.BlockSpec((bk, N, P), lambda i: (i, 0, 0)),       # patches (f32)
            pl.BlockSpec((P, D), lambda i: (0, 0)),              # W^T (resident)
            pl.BlockSpec((N, D), lambda i: (0, 0)),              # pos[1:]+bias
            pl.BlockSpec((bk, 1, D), lambda i: (i, 0, 0)),       # class row+pos[0]
        ],
        out_specs=pl.BlockSpec((bk, N + 1, D), lambda i: (i, 0, 0)),
    )

    return pl.pallas_call(
        _patch_embed_kernel,
        out_shape=jax.ShapeDtypeStruct((B, N + 1, D), out_dtype),
        grid_spec=grid_spec,
        compiler_params=pltpu.CompilerParams(
            dimension_semantics=("parallel",),
            vmem_limit_bytes=vmem_limit),
    )(patches, w, posb, cls)


def _reference(patches, w_t, bias, class_param, pos_emb_table):
    proj = patches @ w_t + bias                                  # (B, N, D)
    cat = jnp.concatenate([class_param, proj], axis=1)           # (B, N+1, D)
    return cat + pos_emb_table[None, :, :]


if __name__ == "__main__":
    # Small shapes consistent with the module.
    batch_size = 2
    num_patches = 8
    patch_size = 4
    embed_dim = 32
    in_dim = patch_size * patch_size * 3                         # 48

    key = jax.random.PRNGKey(0)
    k_x, k_w, k_b, k_cls, k_pos = jax.random.split(key, 5)

    patches = jax.random.normal(k_x, (batch_size, num_patches, in_dim),
                                dtype=jnp.float32)

    # nn.Linear(in_dim, embed_dim): weight (D, P), bias (D,) -> pass W^T.
    bound = 1.0 / jnp.sqrt(in_dim)
    w = jax.random.uniform(k_w, (embed_dim, in_dim), jnp.float32,
                           minval=-bound, maxval=bound)
    w_t = w.T                                                    # (P, D)
    bias = jax.random.uniform(k_b, (embed_dim,), jnp.float32,
                              minval=-bound, maxval=bound)

    # class_parameter = torch.rand(batch, 1, D)  (uniform [0, 1))
    class_param = jax.random.uniform(k_cls, (batch_size, 1, embed_dim),
                                     dtype=jnp.float32)

    # nn.Embedding(num_patches+1, embed_dim): N(0, 1) init; positions are
    # arange(num_patches+1), so the lookup is the full table.
    pos_emb_table = jax.random.normal(k_pos, (num_patches + 1, embed_dim),
                                      dtype=jnp.float32)

    out = patch_embedding(patches, w_t, bias, class_param, pos_emb_table)
    out = jax.block_until_ready(out)

    ref = _reference(patches, w_t, bias, class_param, pos_emb_table)
    assert out.shape == (batch_size, num_patches + 1, embed_dim)
    # bf16 matmul operands (f32 accumulation) -> loosened tolerance vs f32 ref.
    assert jnp.allclose(out, ref, atol=2e-2, rtol=2e-2)

    print("KERNEL_OK")
</pallas_src>

<mosaic_0001>
module attributes {stable_mosaic.version = 11 : i64} {
  func.func @_patch_embed_kernel(%arg0: i32, %arg1: memref<1x8x48xf32, #tpu.memory_space<vmem>>, %arg2: memref<48x32xbf16, #tpu.memory_space<vmem>>, %arg3: memref<8x32xf32, #tpu.memory_space<vmem>>, %arg4: memref<1x1x32xf32, #tpu.memory_space<vmem>>, %arg5: memref<1x9x32xf32, #tpu.memory_space<vmem>>) attributes {dimension_semantics = [#tpu.dimension_semantics<parallel>], iteration_bounds = array<i64: 2>, scalar_prefetch = 0 : i64, scratch_operands = 0 : i64, tpu.core_type = #tpu.core_type<tc>, window_params = [{transform_indices = @transform_0, window_bounds = array<i64: 1, 8, 48>}, {pipeline_mode = #tpu.pipeline_mode<synchronous>, transform_indices = @transform_1, window_bounds = array<i64: 48, 32>}, {pipeline_mode = #tpu.pipeline_mode<synchronous>, transform_indices = @transform_2, window_bounds = array<i64: 8, 32>}, {transform_indices = @transform_3, window_bounds = array<i64: 1, 1, 32>}, {transform_indices = @transform_4, window_bounds = array<i64: 1, 9, 32>}]} {
    %c0 = arith.constant 0 : index
    %c0_0 = arith.constant 0 : index
    %c0_1 = arith.constant 0 : index
    %0 = vector.load %arg1[%c0, %c0_0, %c0_1] : memref<1x8x48xf32, #tpu.memory_space<vmem>>, vector<1x8x48xf32>
    %1 = vector.shape_cast %0 : vector<1x8x48xf32> to vector<8x48xf32>
    %2 = arith.truncf %1 : vector<8x48xf32> to vector<8x48xbf16>
    %c0_2 = arith.constant 0 : index
    %c0_3 = arith.constant 0 : index
    %3 = vector.load %arg2[%c0_2, %c0_3] : memref<48x32xbf16, #tpu.memory_space<vmem>>, vector<48x32xbf16>
    %cst = arith.constant dense<0.000000e+00> : vector<8x32xf32>
    %4 = tpu.matmul %2, %3, %cst {dimension_numbers = #tpu.dot_dimension_numbers<[1], [0], [0], [1], [0, 0, 1, 1], [], []>} : vector<8x48xbf16>, vector<48x32xbf16>, vector<8x32xf32> -> vector<8x32xf32>
    %5 = vector.shape_cast %4 : vector<8x32xf32> to vector<1x8x32xf32>
    %c0_4 = arith.constant 0 : index
    %c0_5 = arith.constant 0 : index
    %6 = vector.load %arg3[%c0_4, %c0_5] : memref<8x32xf32, #tpu.memory_space<vmem>>, vector<8x32xf32>
    %7 = vector.shape_cast %6 : vector<8x32xf32> to vector<1x8x32xf32>
    %8 = arith.addf %5, %7 : vector<1x8x32xf32>
    %c0_6 = arith.constant 0 : index
    %c0_7 = arith.constant 0 : index
    %c0_8 = arith.constant 0 : index
    %9 = vector.load %arg4[%c0_6, %c0_7, %c0_8] : memref<1x1x32xf32, #tpu.memory_space<vmem>>, vector<1x1x32xf32>
    %c0_9 = arith.constant 0 : index
    %c0_10 = arith.constant 0 : index
    %c0_11 = arith.constant 0 : index
    %10 = vector.load %arg5[%c0_9, %c0_10, %c0_11] : memref<1x9x32xf32, #tpu.memory_space<vmem>>, vector<1x1x32xf32>
    tpu.vector_store %arg5[%c0_9, %c0_10, %c0_11], %9 {strides = array<i32>} : memref<1x9x32xf32, #tpu.memory_space<vmem>>, vector<1x1x32xf32>,
    %c0_12 = arith.constant 0 : index
    %c1 = arith.constant 1 : index
    %c0_13 = arith.constant 0 : index
    %11 = vector.load %arg5[%c0_12, %c1, %c0_13] : memref<1x9x32xf32, #tpu.memory_space<vmem>>, vector<1x8x32xf32>
    tpu.vector_store %arg5[%c0_12, %c1, %c0_13], %8 {strides = array<i32>} : memref<1x9x32xf32, #tpu.memory_space<vmem>>, vector<1x8x32xf32>,
    return
  }
  func.func @transform_0(%arg0: i32) -> (i32, i32, i32) {
    %c0_i32 = arith.constant 0 : i32
    %c0_i32_0 = arith.constant 0 : i32
    %c0_i32_1 = arith.constant 0 : i32
    return %arg0, %c0_i32, %c0_i32_0 : i32, i32, i32
  }
  func.func @transform_1(%arg0: i32) -> (i32, i32) {
    %c0_i32 = arith.constant 0 : i32
    %c0_i32_0 = arith.constant 0 : i32
    %c0_i32_1 = arith.constant 0 : i32
    return %c0_i32, %c0_i32_0 : i32, i32
  }
  func.func @transform_2(%arg0: i32) -> (i32, i32) {
    %c0_i32 = arith.constant 0 : i32
    %c0_i32_0 = arith.constant 0 : i32
    %c0_i32_1 = arith.constant 0 : i32
    return %c0_i32, %c0_i32_0 : i32, i32
  }
  func.func @transform_3(%arg0: i32) -> (i32, i32, i32) {
    %c0_i32 = arith.constant 0 : i32
    %c0_i32_0 = arith.constant 0 : i32
    %c0_i32_1 = arith.constant 0 : i32
    return %arg0, %c0_i32, %c0_i32_0 : i32, i32, i32
  }
  func.func @transform_4(%arg0: i32) -> (i32, i32, i32) {
    %c0_i32 = arith.constant 0 : i32
    %c0_i32_0 = arith.constant 0 : i32
    %c0_i32_1 = arith.constant 0 : i32
    return %arg0, %c0_i32, %c0_i32_0 : i32, i32, i32
  }
}

</mosaic_0001>

<llo_original>
// kernel: tpu_custom_call.1
$region0: #{tpu_custom_call.1}
  #allocation0 [shape = 'u32[]', space=smem, size = 0x4, offset = 0x4, fixed_abs, tag = 'smem constant byte address 0x4 - core index']
  #allocation1 [shape = 'u32[144,128]{1,0:T(1,128)}', space=vmem, size = 0x12000, scoped, tag = 'internal scratch']
  %s0 = inlined_call_operand.vmem [shape: f32[2,8,48], index: 0, kind: input, shape index: {}]
  %s1 = inlined_call_operand.vmem [shape: bf16[48,32], index: 1, kind: input, shape index: {}]
  %s2 = inlined_call_operand.vmem [shape: f32[8,32], index: 2, kind: input, shape index: {}]
  %s3 = inlined_call_operand.vmem [shape: f32[2,1,32], index: 3, kind: input, shape index: {}]
  %s4 = inlined_call_operand.vmem [shape: f32[2,9,32], index: 4, kind: output, shape index: {}]
  %s5 = sld [smem:[#allocation0]]
  $region49: #{tpu_custom_call.1} parent=0
    _
  %s7 = ssub.s32 1, %s5
  %s8 = scalar_select 0, %s7, %s5
  loop: start=0, step=1, limit=4
  $region2: #{tpu_custom_call.1} parent=0 // loop_pre_header
    _
  $region3: #{tpu_custom_call.1} parent=0 // loop_header
    %s10 = sphi 0, %s14
    %p11 = scmp.ge.s32.totalorder %s10, 4
    %s20 = sphi 0, %s22
    %s23 = sphi 0, %s20
    %s24 = sphi 0, %s23
    %s40 = sphi 0, %s24
    %s44 = sphi 0, %s44
    %s46 = sphi 0, %s44
    %s47 = sphi 0, %s46
    %s61 = sphi 0, %s47
    %s65 = sphi 0, %s65
    %s67 = sphi 0, %s65
    %s68 = sphi 0, %s67
    %s82 = sphi 0, %s68
    %s88 = sphi 0, %s90
    %s91 = sphi 0, %s88
    %s92 = sphi 0, %s91
    %s108 = sphi 0, %s92
    %s114 = sphi 0, %s116
    %s117 = sphi 0, %s114
    %s118 = sphi 0, %s117
    %s134 = sphi 0, %s118
  $region4: #{tpu_custom_call.1} parent=0 // loop_header_branch
    %13 = sbr.rel (%p11) target = $region8
  $region5: #{tpu_custom_call.1} parent=0 // loop_body
    %s15 = ssub.s32 %s10, 1
    %s16 = ssub.s32 %s10, 2
    %s17 = sadd.s32 %s10, 1
    %s18 = ssub.s32 %s10, %s17
    %p19 = scmp.eq.s32.totalorder %s18, 0
    %s21 = sadd.s32 %s20, 1
    %s22 = scalar_select %p19, %s20, %s21
    %p25 = pneg %p19
    %p26 = scmp.eq.s32.totalorder %s10, 1
    %p27 = por %p25, %p26
    %p28 = scmp.ne.s32.totalorder %s20, %s23
    %p29 = scmp.eq.s32.totalorder %s10, 0
    %p30 = por %p28, %p29
    %p31 = scmp.ne.s32.totalorder %s20, %s23
    %p32 = scmp.eq.s32.totalorder %s15, 1
    %p33 = por %p31, %p32
    %p34 = scmp.ne.s32.totalorder %s23, %s24
    %p35 = scmp.eq.s32.totalorder %s15, 0
    %p36 = por %p34, %p35
    %p37 = scmp.ne.s32.totalorder %s23, %s24
    %p38 = scmp.eq.s32.totalorder %s16, 1
    %p39 = por %p37, %p38
    %p41 = scmp.ne.s32.totalorder %s24, %s40
    %p42 = scmp.eq.s32.totalorder %s16, 0
    %p43 = por %p41, %p42
    %s45 = sadd.s32 %s44, 1
    %p48 = scmp.eq.s32.totalorder %s10, 1
    %p49 = scmp.ne.s32.totalorder %s44, %s46
    %p50 = scmp.eq.s32.totalorder %s10, 0
    %p51 = por %p49, %p50
    %p52 = scmp.ne.s32.totalorder %s44, %s46
    %p53 = scmp.eq.s32.totalorder %s15, 1
    %p54 = por %p52, %p53
    %p55 = scmp.ne.s32.totalorder %s46, %s47
    %p56 = scmp.eq.s32.totalorder %s15, 0
    %p57 = por %p55, %p56
    %p58 = scmp.ne.s32.totalorder %s46, %s47
    %p59 = scmp.eq.s32.totalorder %s16, 1
    %p60 = por %p58, %p59
    %p62 = scmp.ne.s32.totalorder %s47, %s61
    %p63 = scmp.eq.s32.totalorder %s16, 0
    %p64 = por %p62, %p63
    %s66 = sadd.s32 %s65, 1
    %p69 = scmp.eq.s32.totalorder %s10, 1
    %p70 = scmp.ne.s32.totalorder %s65, %s67
    %p71 = scmp.eq.s32.totalorder %s10, 0
    %p72 = por %p70, %p71
    %p73 = scmp.ne.s32.totalorder %s65, %s67
    %p74 = scmp.eq.s32.totalorder %s15, 1
    %p75 = por %p73, %p74
    %p76 = scmp.ne.s32.totalorder %s67, %s68
    %p77 = scmp.eq.s32.totalorder %s15, 0
    %p78 = por %p76, %p77
    %p79 = scmp.ne.s32.totalorder %s67, %s68
    %p80 = scmp.eq.s32.totalorder %s16, 1
    %p81 = por %p79, %p80
    %p83 = scmp.ne.s32.totalorder %s68, %s82
    %p84 = scmp.eq.s32.totalorder %s16, 0
    %p85 = por %p83, %p84
    %s86 = ssub.s32 %s10, %s17
    %p87 = scmp.eq.s32.totalorder %s86, 0
    %s89 = sadd.s32 %s88, 1
    %s90 = scalar_select %p87, %s88, %s89
    %p93 = pneg %p87
    %p94 = scmp.eq.s32.totalorder %s10, 1
    %p95 = por %p93, %p94
    %p96 = scmp.ne.s32.totalorder %s88, %s91
    %p97 = scmp.eq.s32.totalorder %s10, 0
    %p98 = por %p96, %p97
    %p99 = scmp.ne.s32.totalorder %s88, %s91
    %p100 = scmp.eq.s32.totalorder %s15, 1
    %p101 = por %p99, %p100
    %p102 = scmp.ne.s32.totalorder %s91, %s92
    %p103 = scmp.eq.s32.totalorder %s15, 0
    %p104 = por %p102, %p103
    %p105 = scmp.ne.s32.totalorder %s91, %s92
    %p106 = scmp.eq.s32.totalorder %s16, 1
    %p107 = por %p105, %p106
    %p109 = scmp.ne.s32.totalorder %s92, %s108
    %p110 = scmp.eq.s32.totalorder %s16, 0
    %p111 = por %p109, %p110
    %s112 = ssub.s32 %s10, %s17
    %p113 = scmp.eq.s32.totalorder %s112, 0
    %s115 = sadd.s32 %s114, 1
    %s116 = scalar_select %p113, %s114, %s115
    %p119 = pneg %p113
    %p120 = scmp.eq.s32.totalorder %s10, 1
    %p121 = por %p119, %p120
    %p122 = scmp.ne.s32.totalorder %s114, %s117
    %p123 = scmp.eq.s32.totalorder %s10, 0
    %p124 = por %p122, %p123
    %p125 = scmp.ne.s32.totalorder %s114, %s117
    %p126 = scmp.eq.s32.totalorder %s15, 1
    %p127 = por %p125, %p126
    %p128 = scmp.ne.s32.totalorder %s117, %s118
    %p129 = scmp.eq.s32.totalorder %s15, 0
    %p130 = por %p128, %p129
    %p131 = scmp.ne.s32.totalorder %s117, %s118
    %p132 = scmp.eq.s32.totalorder %s16, 1
    %p133 = por %p131, %p132
    %p135 = scmp.ne.s32.totalorder %s118, %s134
    %p136 = scmp.eq.s32.totalorder %s16, 0
    %p137 = por %p135, %p136
    %p138 = scmp.le.s32.totalorder 1, %s10
    %p139 = scmp.lt.s32.totalorder %s10, 3
    %p140 = pnand %p138, %p139
    %p141 = pneg %p140
    // Predicated region
    $region9: #{tpu_custom_call.1} parent=5 // pred_check
      _
    $region10: #{tpu_custom_call.1} parent=5 // pred_check_branch
      %143 = sbr.rel (%p140) target = $region12
    $region11: #{tpu_custom_call.1} parent=5 // pred_region
      %s144 = ssub.s32 %s10, 1
      // Predicated region
      $region13: #{tpu_custom_call.1} parent=11 // pred_check
        %p145 = pneg %p57
      $region14: #{tpu_custom_call.1} parent=11 // pred_check_branch
        %147 = sbr.rel (%p145) target = $region16
      $region15: #{tpu_custom_call.1} parent=11 // pred_region
        _
      $region16: #{tpu_custom_call.1} parent=11 // pred_fallthru
        _
      // Predicated region
      $region17: #{tpu_custom_call.1} parent=11 // pred_check
        %p148 = pneg %p78
      $region18: #{tpu_custom_call.1} parent=11 // pred_check_branch
        %150 = sbr.rel (%p148) target = $region20
      $region19: #{tpu_custom_call.1} parent=11 // pred_region
        _
      $region20: #{tpu_custom_call.1} parent=11 // pred_fallthru
        _
    $region12: #{tpu_custom_call.1} parent=5 // pred_fallthru
      _
    %p151 = scmp.lt.s32.totalorder %s10, 2
    // Predicated region
    $region21: #{tpu_custom_call.1} parent=5 // pred_check
      %p152 = pneg %p151
    $region22: #{tpu_custom_call.1} parent=5 // pred_check_branch
      %154 = sbr.rel (%p152) target = $region24
    $region23: #{tpu_custom_call.1} parent=5 // pred_region
      // Predicated region
      $region25: #{tpu_custom_call.1} parent=23 // pred_check
        %p155 = pneg %p30
      $region26: #{tpu_custom_call.1} parent=23 // pred_check_branch
        %157 = sbr.rel (%p155) target = $region28
      $region27: #{tpu_custom_call.1} parent=23 // pred_region
        %p158 = scmp.lt.s32.totalorder %s10, 1
        %s159 = scalar_select %p158, %s10, 1
        %s160 = smul.addr %s159, 8
        %s161 = scalar_lea.vmem %s0, %s160
      $region28: #{tpu_custom_call.1} parent=23 // pred_fallthru
        _
      // Predicated region
      $region29: #{tpu_custom_call.1} parent=23 // pred_check
        %p162 = pneg %p98
      $region30: #{tpu_custom_call.1} parent=23 // pred_check_branch
        %164 = sbr.rel (%p162) target = $region32
      $region31: #{tpu_custom_call.1} parent=23 // pred_region
        %p165 = scmp.lt.s32.totalorder %s10, 1
        %s166 = scalar_select %p165, %s10, 1
        %s167 = scalar_lea.vmem %s3, %s166
      $region32: #{tpu_custom_call.1} parent=23 // pred_fallthru
        _
    $region24: #{tpu_custom_call.1} parent=5 // pred_fallthru
      _
    %p168 = scmp.le.s32.totalorder 1, %s10
    %p169 = scmp.lt.s32.totalorder %s10, 3
    %p170 = pnand %p168, %p169
    %p171 = pneg %p170
    // Predicated region
    $region33: #{tpu_custom_call.1} parent=5 // pred_check
      _
    $region34: #{tpu_custom_call.1} parent=5 // pred_check_branch
      %173 = sbr.rel (%p170) target = $region36
    $region35: #{tpu_custom_call.1} parent=5 // pred_region
      %s174 = ssub.s32 %s10, 1
      %p175 = scmp.lt.s32.totalorder %s15, 1
      %s176 = scalar_select %p175, %s15, 1
      %s177 = smul.addr %s176, 8
      %s178 = scalar_lea.vmem %s0, %s177
      %p179 = pneg %p36
      %p180 = pneg %p33
      %p181 = pneg %p57
      %p182 = pneg %p54
      %p183 = pneg %p78
      %p184 = pneg %p75
      %p185 = scmp.lt.s32.totalorder %s15, 1
      %s186 = scalar_select %p185, %s15, 1
      %s187 = scalar_lea.vmem %s3, %s186
      %p188 = pneg %p104
      %p189 = pneg %p101
      %p190 = pneg %p130
      %p191 = pneg %p127
      %p192 = scmp.lt.s32.totalorder %s15, 1
      %s193 = scalar_select %p192, %s15, 1
      %s194 = smul.addr %s193, 2
      %s195 = smul.addr %s194, 8
      %s196 = scalar_lea.vmem %s4, %s195
      %p197 = scmp.lt.s32.totalorder %s15, 1
      %s198 = scalar_select %p197, %s15, 1
      %s199 = smul.addr %s198, 8
      %s200 = scalar_lea.vmem %s0, %s199
      %p201 = scmp.lt.s32.totalorder %s15, 1
      %s202 = scalar_select %p201, %s15, 1
      %s203 = scalar_lea.vmem %s3, %s202
      %p204 = scmp.lt.s32.totalorder %s15, 1
      %s205 = scalar_select %p204, %s15, 1
      %s206 = smul.addr %s205, 2
      %s207 = smul.addr %s206, 8
      %s208 = scalar_lea.vmem %s4, %s207
      %v210 = vld [vmem:[%s200] sm:$0xff]
      %v211 = vpack.c.bf16 %v210, %v210
      %v212 = vld [vmem:[%s1] sm:$0xf]
      %v213 = vld [vmem:[%s1 + $0x4] sm:$0xf]
      %v214 = vld [vmem:[%s1 + $0x8] sm:$0xf]
      %v215 = vld [vmem:[%s1 + $0xc] sm:$0xf]
      %v216 = vld [vmem:[%s1 + $0x10] sm:$0xf]
      %v217 = vld [vmem:[%s1 + $0x14] sm:$0xf]
      %v224 = vunpack.c.l.b16 %v212
      %v225 = vunpack.c.l.b16 %v213
      %v226 = vunpack.c.l.b16 %v214
      %v227 = vunpack.c.l.b16 %v215
      %v228 = vunpack.c.l.b16 %v216
      %v229 = vunpack.c.l.b16 %v217
      %v230 = vpack.c.b16 %v225, %v224
      %v231 = vpack.c.b16 %v227, %v226
      %v232 = vpack.c.b16 %v229, %v228
      %vm236 = vcmask 392192
      %v238 = vsel %vm236, %v211, 0
      %240 = vmatprep.subr.bf16.mxu0 0
      %241 = vmatpush1.bf16.msra.mxu0 %v230
      %242 = vmatprep.subr.bf16.mxu0 0
      %243 = vmatpush1.bf16.msra.mxu0 %v231
      %244 = vmatprep.subr.bf16.mxu0 0
      %245 = vmatpush1.bf16.msra.mxu0 %v232
      %246 = vmatprep.subr.bf16.mxu0 0
      %247 = vmatpush1.bf16.msra.mxu0 0
      %248 = vmatprep.subr.bf16.mxu0 0
      %249 = vmatpush1.bf16.msra.mxu0 0
      %250 = vmatprep.subr.bf16.mxu0 0
      %251 = vmatpush1.bf16.msra.mxu0 0
      %252 = vmatprep.subr.bf16.mxu0 0
      %253 = vmatpush1.bf16.msra.mxu0 0
      %254 = vmatprep.subr.bf16.mxu0 0
      %255 = vmatpush1.bf16.msra.mxu0 0
      %256 = vmatprep.subr.bf16.mxu0 0
      %257 = vmatpush1.bf16.msra.mxu0 0
      %258 = vmatprep.subr.bf16.mxu0 0
      %259 = vmatpush1.bf16.msra.mxu0 0
      %260 = vmatprep.subr.bf16.mxu0 0
      %261 = vmatpush1.bf16.msra.mxu0 0
      %262 = vmatprep.subr.bf16.mxu0 0
      %263 = vmatpush1.bf16.msra.mxu0 0
      %264 = vmatprep.subr.bf16.mxu0 0
      %265 = vmatpush1.bf16.msra.mxu0 0
      %266 = vmatprep.subr.bf16.mxu0 0
      %267 = vmatpush1.bf16.msra.mxu0 0
      %268 = vmatprep.subr.bf16.mxu0 0
      %269 = vmatpush1.bf16.msra.mxu0 0
      %270 = vmatprep.subr.bf16.mxu0 0
      %271 = vmatpush1.bf16.msra.mxu0 0
      %272 = vmatprep.mubr.bf16.mxu0 0
      %273 = vmatmul.mubr.bf16.gmra.mrb[0].mxu0 %v238
      %v274 = vpop.f32.mrb[0].mxu0
      %v275 = vadd.f32 0.0, %v274
      %v276 = vpop.f32.mrb[0].mxu0
      %v277 = vpop.f32.mrb[0].mxu0
      %v278 = vpop.f32.mrb[0].mxu0
      %279 = vdwg.mxu0
      %v280 = vld [vmem:[%s2] sm:$0xff]
      %v281 = vadd.f32 %v275, %v280
      %v282 = vld [vmem:[%s203] sm:$0x1]
      %vm283 = vcmask 253952
      %284 = vst.msk [vmem:[%s208] sm:$0x1] %vm283, %v282
      %vm285 = vcmask 261120
      %286 = vst.msk [vmem:[%s208 + $0x1] sm:$0xff] %vm285, %v281
      %p287 = scmp.lt.s32.totalorder %s15, 1
      %s288 = scalar_select %p287, %s15, 1
      %s289 = smul.addr %s288, 2
      %s290 = smul.addr %s289, 8
      %s291 = scalar_lea.vmem %s4, %s290
      // Predicated region
      $region37: #{tpu_custom_call.1} parent=35 // pred_check
        %p292 = pneg %p127
      $region38: #{tpu_custom_call.1} parent=35 // pred_check_branch
        %294 = sbr.rel (%p292) target = $region40
      $region39: #{tpu_custom_call.1} parent=35 // pred_region
        _
      $region40: #{tpu_custom_call.1} parent=35 // pred_fallthru
        _
    $region36: #{tpu_custom_call.1} parent=5 // pred_fallthru
      _
    %p295 = scmp.le.s32.totalorder 2, %s10
    // Predicated region
    $region41: #{tpu_custom_call.1} parent=5 // pred_check
      %p296 = pneg %p295
    $region42: #{tpu_custom_call.1} parent=5 // pred_check_branch
      %298 = sbr.rel (%p296) target = $region44
    $region43: #{tpu_custom_call.1} parent=5 // pred_region
      %s299 = ssub.s32 %s10, 2
      // Predicated region
      $region45: #{tpu_custom_call.1} parent=43 // pred_check
        %p300 = pneg %p133
      $region46: #{tpu_custom_call.1} parent=43 // pred_check_branch
        %302 = sbr.rel (%p300) target = $region48
      $region47: #{tpu_custom_call.1} parent=43 // pred_region
        %p303 = scmp.lt.s32.totalorder %s16, 1
        %s304 = scalar_select %p303, %s16, 1
        %s305 = smul.addr %s304, 2
        %s306 = smul.addr %s305, 8
        %s307 = scalar_lea.vmem %s4, %s306
      $region48: #{tpu_custom_call.1} parent=43 // pred_fallthru
        _
    $region44: #{tpu_custom_call.1} parent=5 // pred_fallthru
      _
  $region6: #{tpu_custom_call.1} parent=0 // loop_footer
    %s14 = sadd.s32 1, %s10
  $region7: #{tpu_custom_call.1} parent=0 // loop_footer_branch
    %9 = sbr.rel target = $region3
  $region8: #{tpu_custom_call.1} parent=0 // loop_exit
    _

</llo_original>
